<compile_context>
chip_gen: v5e
topology: v5e:2x2
jax: 0.10.0
libtpu: 0.0.40
codegen_flags: <defaults>
</compile_context>

<pallas_src>
import jax
import jax.numpy as jnp
from jax import lax
from jax.experimental import pallas as pl
from jax.experimental.pallas import tpu as pltpu


_TILE_R = 2048          # rows per grid step: 2048*512*4B = 4 MiB per f32 input block
_CHUNK_R = 256          # rows per in-kernel compute chunk (bounds temporaries)
_VMEM_LIMIT = 32 * 1024 * 1024


def _round_up(a, b):
    return ((a + b - 1) // b) * b


def _tensorcores_per_chip() -> int:
    """Best-effort TensorCore count; conservatively falls back to 1."""
    try:
        info = pltpu.get_tpu_info()
    except Exception:
        return 1
    for name in ("num_cores", "cores_per_chip", "num_tensorcores",
                 "tensorcores_per_chip", "core_count"):
        v = getattr(info, name, None)
        if isinstance(v, int) and v >= 1:
            return v
    return 1


def vae_loss(x, x_recon, z_mean, z_log_var):
    """x, x_recon: probabilities in (0,1), same shape; z_*: (B, Z). Returns scalar."""
    total = x.size

    # Lane width: largest of {512, 256, 128} dividing the element count, so the
    # (rows, lane) reshape is a free bitcast view (no HBM copy).
    lane = next((l for l in (512, 256, 128) if total % l == 0), None)
    if lane is None:
        # Rare fallback: pad by < 128 elements so the 2-D reshape is legal.
        # Pad value (x=1, x_recon=1) contributes exactly 0 BCE.
        lane = 128
        pad = (-total) % lane
        rows = (total + pad) // lane
        x2 = jnp.pad(x.reshape(-1), (0, pad), constant_values=1.0).reshape(rows, lane)
        xr2 = jnp.pad(x_recon.reshape(-1), (0, pad), constant_values=1.0).reshape(rows, lane)
    else:
        rows = total // lane
        x2 = x.reshape(rows, lane)        # free reshape, no copy
        xr2 = x_recon.reshape(rows, lane)

    # Core split: extent-2 CORE_PARALLEL axis only on 2-TC chips (v7x).
    num_parts = 2 if _tensorcores_per_chip() >= 2 else 1

    rows_per_part = pl.cdiv(rows, num_parts)
    tile_r = min(_TILE_R, _round_up(rows_per_part, 8))
    chunk_r = min(_CHUNK_R, tile_r)            # multiple of 8 by construction
    tile_r = _round_up(tile_r, chunk_r)        # tile divisible by chunk
    tiles_per_part = pl.cdiv(rows_per_part, tile_r)
    n_chunks = tile_r // chunk_r

    def kernel(x_ref, xr_ref, out_ref, acc_ref):
        p = pl.program_id(0)
        i = pl.program_id(1)

        @pl.when(i == 0)
        def _init():
            acc_ref[...] = jnp.zeros_like(acc_ref)

        tile_base = (p * tiles_per_part + i) * tile_r
        # Hoisted iota (row index within a chunk), reused by every chunk.
        row_iota = lax.broadcasted_iota(jnp.int32, (chunk_r, lane), 0)

        @pl.when(tile_base < rows)
        def _accumulate():
            def body(j, carry):
                r0 = pl.multiple_of(j * chunk_r, chunk_r)
                # Mask rows past the true row count: masked elements are set to
                # (x=1, x_recon=1) whose clamped BCE term is exactly 0.
                valid = row_iota < (rows - tile_base - r0)
                xb = jnp.where(valid, x_ref[pl.ds(r0, chunk_r), :].astype(jnp.float32), 1.0)
                xrb = jnp.where(valid, xr_ref[pl.ds(r0, chunk_r), :].astype(jnp.float32), 1.0)

                # F.binary_cross_entropy(..., reduction='sum'):
                #   sum(-(x*log(p) + (1-x)*log(1-p))), logs clamped at -100.
                log_p = jnp.maximum(jnp.log(xrb), -100.0)
                log_1mp = jnp.maximum(jnp.log(1.0 - xrb), -100.0)
                term = log_1mp + xb * (log_p - log_1mp)

                # VPU-only fold into the lane-dense (8, lane) accumulator.
                acc_ref[...] += jnp.sum(term.reshape(chunk_r // 8, 8, lane), axis=0)
                return carry

            lax.fori_loop(0, n_chunks, body, 0, unroll=True)

        @pl.when(i == pl.num_programs(1) - 1)
        def _finalize():
            out_ref[...] = -acc_ref[...][None]   # negate pre-negation sum -> +BCE

        # TODO(synk): optionally sweep pipeline_mode=pl.Buffered(3) on the two
        # input BlockSpecs if a trace shows exposed DMA at tile transitions.

    partials = pl.pallas_call(
        kernel,
        out_shape=jax.ShapeDtypeStruct((num_parts, 8, lane), jnp.float32),
        grid_spec=pltpu.PrefetchScalarGridSpec(
            num_scalar_prefetch=0,
            grid=(num_parts, tiles_per_part),
            in_specs=[
                pl.BlockSpec((tile_r, lane), lambda p, i: (p * tiles_per_part + i, 0)),
                pl.BlockSpec((tile_r, lane), lambda p, i: (p * tiles_per_part + i, 0)),
            ],
            out_specs=pl.BlockSpec((1, 8, lane), lambda p, i: (p, 0, 0)),
            scratch_shapes=[pltpu.VMEM((8, lane), jnp.float32)],
        ),
        compiler_params=pltpu.CompilerParams(
            dimension_semantics=(
                pltpu.CORE_PARALLEL if num_parts > 1 else pltpu.ARBITRARY,
                pltpu.ARBITRARY,
            ),
            vmem_limit_bytes=_VMEM_LIMIT,
        ),
    )(x2, xr2)

    # Tiny final cross-lane reduce of the lane-dense partial blocks.
    bce = jnp.sum(partials)

    # KLD is a tiny O(B*Z) term: computed in plain JAX, overlapped by XLA.
    zm = z_mean.astype(jnp.float32)
    zlv = z_log_var.astype(jnp.float32)
    kld = -0.5 * jnp.sum(1.0 + zlv - zm * zm - jnp.exp(zlv))
    return bce + kld


def _reference(x, x_recon, z_mean, z_log_var):
    log_p = jnp.maximum(jnp.log(x_recon), -100.0)
    log_1mp = jnp.maximum(jnp.log(1.0 - x_recon), -100.0)
    bce = -jnp.sum(x * log_p + (1.0 - x) * log_1mp)
    kld = -0.5 * jnp.sum(1.0 + z_log_var - z_mean**2 - jnp.exp(z_log_var))
    return bce + kld


if __name__ == "__main__":
    key = jax.random.PRNGKey(0)
    k1, k2, k3, k4 = jax.random.split(key, 4)

    N, C, H, W = 2, 4, 16, 16
    B, Z = 2, 32

    # Targets in [0,1], reconstructions strictly in (0,1).
    x = jax.random.uniform(k1, (N, C, H, W), dtype=jnp.float32)
    x_recon = jax.nn.sigmoid(jax.random.normal(k2, (N, C, H, W), dtype=jnp.float32))
    z_mean = jax.random.normal(k3, (B, Z), dtype=jnp.float32)
    z_log_var = 0.1 * jax.random.normal(k4, (B, Z), dtype=jnp.float32)

    loss = vae_loss(x, x_recon, z_mean, z_log_var)
    jax.block_until_ready(loss)

    ref = _reference(x, x_recon, z_mean, z_log_var)
    assert jnp.allclose(loss, ref, rtol=1e-5, atol=1e-3), (loss, ref)

    print("KERNEL_OK")
</pallas_src>

<mosaic_0001>
module attributes {stable_mosaic.version = 11 : i64} {
  func.func @kernel(%arg0: i32, %arg1: i32, %arg2: memref<8x512xf32, #tpu.memory_space<vmem>>, %arg3: memref<8x512xf32, #tpu.memory_space<vmem>>, %arg4: memref<1x8x512xf32, #tpu.memory_space<vmem>>, %arg5: memref<8x512xf32, #tpu.memory_space<vmem>>) attributes {dimension_semantics = [#tpu.dimension_semantics<arbitrary>, #tpu.dimension_semantics<arbitrary>], iteration_bounds = array<i64: 1, 1>, scalar_prefetch = 0 : i64, scratch_operands = 1 : i64, tpu.core_type = #tpu.core_type<tc>, window_params = [{transform_indices = @transform_0, window_bounds = array<i64: 8, 512>}, {transform_indices = @transform_1, window_bounds = array<i64: 8, 512>}, {transform_indices = @transform_2, window_bounds = array<i64: 1, 8, 512>}]} {
    %c0_i32 = arith.constant 0 : i32
    %0 = arith.cmpi eq, %arg1, %c0_i32 : i32
    %1 = arith.extui %0 : i1 to i32
    %c0_i32_0 = arith.constant 0 : i32
    %2 = arith.cmpi ne, %1, %c0_i32_0 : i32
    scf.if %2 {
      %cst = arith.constant 0.000000e+00 : f32
      %13 = vector.broadcast %cst : f32 to vector<8x512xf32>
      %c0 = arith.constant 0 : index
      %c0_4 = arith.constant 0 : index
      %14 = vector.load %arg5[%c0, %c0_4] : memref<8x512xf32, #tpu.memory_space<vmem>>, vector<8x512xf32>
      tpu.vector_store %arg5[%c0, %c0_4], %13 {strides = array<i32>} : memref<8x512xf32, #tpu.memory_space<vmem>>, vector<8x512xf32>,
    } else {
    }
    %c1_i32 = arith.constant 1 : i32
    %3 = arith.muli %arg0, %c1_i32 : i32
    %4 = arith.addi %3, %arg1 : i32
    %c8_i32 = arith.constant 8 : i32
    %5 = arith.muli %4, %c8_i32 : i32
    %6 = tpu.iota {dimensions = array<i32: 0>} : vector<8x512xi32>
    %c4_i32 = arith.constant 4 : i32
    %7 = arith.cmpi slt, %5, %c4_i32 : i32
    %8 = arith.extui %7 : i1 to i32
    %c0_i32_1 = arith.constant 0 : i32
    %9 = arith.cmpi ne, %8, %c0_i32_1 : i32
    scf.if %9 {
      %c0_i32_4 = arith.constant 0 : i32
      %c8_i32_5 = arith.constant 8 : i32
      %13 = arith.muli %c0_i32_4, %c8_i32_5 : i32
      %14 = tpu.assume_multiple %13, 8 : i32
      %c4_i32_6 = arith.constant 4 : i32
      %15 = arith.subi %c4_i32_6, %5 : i32
      %16 = arith.subi %15, %14 : i32
      %17 = vector.broadcast %16 : i32 to vector<8x512xi32>
      %18 = arith.cmpi slt, %6, %17 : vector<8x512xi32>
      %19 = arith.index_cast %14 : i32 to index
      %c0 = arith.constant 0 : index
      %20 = vector.load %arg2[%19, %c0] : memref<8x512xf32, #tpu.memory_space<vmem>>, vector<8x512xf32>
      %cst = arith.constant 1.000000e+00 : f32
      %21 = vector.broadcast %cst : f32 to vector<8x512xf32>
      %22 = arith.select %18, %20, %21 : vector<8x512xi1>, vector<8x512xf32>
      %23 = arith.index_cast %14 : i32 to index
      %c0_7 = arith.constant 0 : index
      %24 = vector.load %arg3[%23, %c0_7] : memref<8x512xf32, #tpu.memory_space<vmem>>, vector<8x512xf32>
      %cst_8 = arith.constant 1.000000e+00 : f32
      %25 = vector.broadcast %cst_8 : f32 to vector<8x512xf32>
      %26 = arith.select %18, %24, %25 : vector<8x512xi1>, vector<8x512xf32>
      %27 = math.log %26 : vector<8x512xf32>
      %cst_9 = arith.constant -1.000000e+02 : f32
      %28 = vector.broadcast %cst_9 : f32 to vector<8x512xf32>
      %29 = arith.maximumf %27, %28 : vector<8x512xf32>
      %cst_10 = arith.constant 1.000000e+00 : f32
      %30 = vector.broadcast %cst_10 : f32 to vector<8x512xf32>
      %31 = arith.subf %30, %26 : vector<8x512xf32>
      %32 = math.log %31 : vector<8x512xf32>
      %cst_11 = arith.constant -1.000000e+02 : f32
      %33 = vector.broadcast %cst_11 : f32 to vector<8x512xf32>
      %34 = arith.maximumf %32, %33 : vector<8x512xf32>
      %35 = arith.subf %29, %34 : vector<8x512xf32>
      %36 = arith.mulf %22, %35 : vector<8x512xf32>
      %37 = arith.addf %34, %36 : vector<8x512xf32>
      %c0_12 = arith.constant 0 : index
      %c0_13 = arith.constant 0 : index
      %38 = vector.load %arg5[%c0_12, %c0_13] : memref<8x512xf32, #tpu.memory_space<vmem>>, vector<8x512xf32>
      %39 = vector.shape_cast %37 : vector<8x512xf32> to vector<1x8x512xf32>
      %cst_14 = arith.constant dense<0.000000e+00> : vector<8x512xf32>
      %40 = vector.multi_reduction <add>, %39, %cst_14 [0] : vector<1x8x512xf32> to vector<8x512xf32>
      %41 = arith.addf %38, %40 : vector<8x512xf32>
      %c0_15 = arith.constant 0 : index
      %c0_16 = arith.constant 0 : index
      %42 = vector.load %arg5[%c0_15, %c0_16] : memref<8x512xf32, #tpu.memory_space<vmem>>, vector<8x512xf32>
      tpu.vector_store %arg5[%c0_15, %c0_16], %41 {strides = array<i32>} : memref<8x512xf32, #tpu.memory_space<vmem>>, vector<8x512xf32>,
      %c1_i32_17 = arith.constant 1 : i32
    } else {
    }
    %c0_i32_2 = arith.constant 0 : i32
    %10 = arith.cmpi eq, %arg1, %c0_i32_2 : i32
    %11 = arith.extui %10 : i1 to i32
    %c0_i32_3 = arith.constant 0 : i32
    %12 = arith.cmpi ne, %11, %c0_i32_3 : i32
    scf.if %12 {
      %c0 = arith.constant 0 : index
      %c0_4 = arith.constant 0 : index
      %13 = vector.load %arg5[%c0, %c0_4] : memref<8x512xf32, #tpu.memory_space<vmem>>, vector<8x512xf32>
      %14 = vector.shape_cast %13 : vector<8x512xf32> to vector<1x8x512xf32>
      %cst = arith.constant 0.000000e+00 : f32
      %15 = vector.broadcast %cst : f32 to vector<1x8x512xf32>
      %16 = arith.subf %15, %14 : vector<1x8x512xf32>
      %c0_5 = arith.constant 0 : index
      %c0_6 = arith.constant 0 : index
      %c0_7 = arith.constant 0 : index
      %17 = vector.load %arg4[%c0_5, %c0_6, %c0_7] : memref<1x8x512xf32, #tpu.memory_space<vmem>>, vector<1x8x512xf32>
      tpu.vector_store %arg4[%c0_5, %c0_6, %c0_7], %16 {strides = array<i32>} : memref<1x8x512xf32, #tpu.memory_space<vmem>>, vector<1x8x512xf32>,
    } else {
    }
    return
  }
  func.func @transform_0(%arg0: i32, %arg1: i32) -> (i32, i32) {
    %c1_i32 = arith.constant 1 : i32
    %0 = arith.muli %arg0, %c1_i32 : i32
    %1 = arith.addi %0, %arg1 : i32
    %c0_i32 = arith.constant 0 : i32
    %c0_i32_0 = arith.constant 0 : i32
    return %1, %c0_i32 : i32, i32
  }
  func.func @transform_1(%arg0: i32, %arg1: i32) -> (i32, i32) {
    %c1_i32 = arith.constant 1 : i32
    %0 = arith.muli %arg0, %c1_i32 : i32
    %1 = arith.addi %0, %arg1 : i32
    %c0_i32 = arith.constant 0 : i32
    %c0_i32_0 = arith.constant 0 : i32
    return %1, %c0_i32 : i32, i32
  }
  func.func @transform_2(%arg0: i32, %arg1: i32) -> (i32, i32, i32) {
    %c0_i32 = arith.constant 0 : i32
    %c0_i32_0 = arith.constant 0 : i32
    %c0_i32_1 = arith.constant 0 : i32
    return %arg0, %c0_i32, %c0_i32_0 : i32, i32, i32
  }
}

</mosaic_0001>

<llo_original>
// kernel: tpu_custom_call.1
$region0: #{tpu_custom_call.1}
  #allocation0 [shape = 'u32[]', space=smem, size = 0x4, offset = 0x4, fixed_abs, tag = 'smem constant byte address 0x4 - core index']
  #allocation1 [shape = 'u32[72,128]{1,0:T(1,128)}', space=vmem, size = 0x9000, scoped, tag = 'internal scratch']
  #allocation2 [shape = 'f32[8,512]{1,0:T(8,128)}', space=vmem, size = 0x4000, scoped, tag = 'scratch operand']
  %s0 = inlined_call_operand.hbm [shape: f32[4,512], index: 0, kind: input, shape index: {}]
  %s1 = inlined_call_operand.hbm [shape: f32[4,512], index: 1, kind: input, shape index: {}]
  %s2 = inlined_call_operand.hbm [shape: f32[1,8,512], index: 2, kind: output, shape index: {}]
  %s3 = sld [smem:[#allocation0]]
  $region38: #{tpu_custom_call.1} parent=0
    _
  %s5 = ssub.s32 1, %s3
  %s6 = scalar_select 0, %s5, %s3
  $region1: #{tpu_custom_call.1} parent=0
    #allocation3 [shape = 'u8[16384]{0}', space=vmem, size = 0x4000, scoped, tag = 'input window, operand 0, single buffered']
    #allocation4 [shape = 's32[1]{0}', space=sflag, size = 0x4, scoped, tag = 'scoped memory for tpu_custom_call.1']
    #allocation5 [shape = 's32[1]{0}', space=sflag, size = 0x4, scoped, tag = 'scoped memory for tpu_custom_call.1']
    #allocation6 [shape = 'u8[16384]{0}', space=vmem, size = 0x4000, scoped, tag = 'input window, operand 1, single buffered']
    #allocation7 [shape = 's32[1]{0}', space=sflag, size = 0x4, scoped, tag = 'scoped memory for tpu_custom_call.1']
    #allocation8 [shape = 'u8[16384]{0}', space=vmem, size = 0x4000, scoped, tag = 'output window, operand 0, single buffered']
    %7 = vsyncpa [#allocation4], 0
    %8 = vsyncpa [#allocation7], 0
    %9 = vsyncpa [#allocation5], 0
    // Predicated region
    $region2: #{tpu_custom_call.1} parent=1 // pred_check
      _
    $region3: #{tpu_custom_call.1} parent=1 // pred_check_branch
      %11 = sbr.rel (0) target = $region5
    $region4: #{tpu_custom_call.1} parent=1 // pred_region
      %s12 = sadd.s32 0, 0
      %s13 = smul.u32 2, %s12
      %s14 = ssub.s32 1, %s13
      %s15 = smul.u32 4, %s14
      %s16 = smul.u32 %s15, 4
      %s17 = ssub.s32 32, %s16
      %s18 = sshll.u32 %s17, 4
      %19 = vsyncadd [#allocation4], %s18
      %p20 = scmp.ne.s32.totalorder 0, %s16
      %s21 = smul.addr %s13, 4
      %s22 = smul.addr %s21, 4
      %s23 = scalar_lea.hbm %s0, %s22
      %s24 = smul.u32 16, %s14
      %s25 = sshll.u32 %s23, 4
      %s26 = int_to_ptr.hbm [resolvable:$true] %s25
      %s27 = sshll.u32 [#allocation3], 4
      %s28 = int_to_ptr.vmem [resolvable:$true] %s27
      %s29 = sshll.u32 %s24, 4
      %33 = dma.hbm_to_vmem [thread:$0]  (%p20), %s26, %s29, %s28, [#allocation4], 256, 256, 16
    $region5: #{tpu_custom_call.1} parent=1 // pred_fallthru
      _
    // Predicated region
    $region6: #{tpu_custom_call.1} parent=1 // pred_check
      _
    $region7: #{tpu_custom_call.1} parent=1 // pred_check_branch
      %35 = sbr.rel (0) target = $region9
    $region8: #{tpu_custom_call.1} parent=1 // pred_region
      %s36 = sadd.s32 0, 0
      %s37 = smul.u32 2, %s36
      %s38 = ssub.s32 1, %s37
      %s39 = smul.u32 4, %s38
      %s40 = smul.u32 %s39, 4
      %s41 = ssub.s32 32, %s40
      %s42 = sshll.u32 %s41, 4
      %43 = vsyncadd [#allocation7], %s42
      %p44 = scmp.ne.s32.totalorder 0, %s40
      %s45 = smul.addr %s37, 4
      %s46 = smul.addr %s45, 4
      %s47 = scalar_lea.hbm %s1, %s46
      %s48 = smul.u32 16, %s38
      %s49 = sshll.u32 %s47, 4
      %s50 = int_to_ptr.hbm [resolvable:$true] %s49
      %s51 = sshll.u32 [#allocation6], 4
      %s52 = int_to_ptr.vmem [resolvable:$true] %s51
      %s53 = sshll.u32 %s48, 4
      %57 = dma.hbm_to_vmem [thread:$0]  (%p44), %s50, %s53, %s52, [#allocation7], 256, 256, 16
    $region9: #{tpu_custom_call.1} parent=1 // pred_fallthru
      _
    // Predicated region
    $region10: #{tpu_custom_call.1} parent=1 // pred_check
      _
    $region11: #{tpu_custom_call.1} parent=1 // pred_check_branch
      %59 = sbr.rel (0) target = $region13
    $region12: #{tpu_custom_call.1} parent=1 // pred_region
      %61 = dma.done [#allocation4], 512
    $region13: #{tpu_custom_call.1} parent=1 // pred_fallthru
      _
    // Predicated region
    $region14: #{tpu_custom_call.1} parent=1 // pred_check
      _
    $region15: #{tpu_custom_call.1} parent=1 // pred_check_branch
      %63 = sbr.rel (0) target = $region17
    $region16: #{tpu_custom_call.1} parent=1 // pred_region
      %65 = dma.done [#allocation7], 512
    $region17: #{tpu_custom_call.1} parent=1 // pred_fallthru
      _
    %s66 = sadd.s32 0, 0
    %s67 = smul.u32 2, %s66
    %s68 = ssub.s32 1, %s67
    %s69 = smul.u32 4, %s68
    %s70 = smul.u32 %s69, 4
    %s71 = sadd.s32 0, 0
    %s72 = smul.u32 2, %s71
    %s73 = ssub.s32 1, %s72
    %s74 = smul.u32 4, %s73
    %s75 = smul.u32 %s74, 4
    %p76 = scmp.eq.s32.totalorder 0, 0
    // Predicated region
    $region18: #{tpu_custom_call.1} parent=1 // pred_check
      %p77 = pneg %p76
    $region19: #{tpu_custom_call.1} parent=1 // pred_check_branch
      %79 = sbr.rel (%p77) target = $region21
    $region20: #{tpu_custom_call.1} parent=1 // pred_region
      %80 = vst [vmem:[#allocation2] sm:$0xff] 0.0
      %81 = vst [vmem:[#allocation2 + $0x8] sm:$0xff] 0.0
      %82 = vst [vmem:[#allocation2 + $0x10] sm:$0xff] 0.0
      %83 = vst [vmem:[#allocation2 + $0x18] sm:$0xff] 0.0
    $region21: #{tpu_custom_call.1} parent=1 // pred_fallthru
      _
    %s84 = sadd.s32 0, 0
    %s85 = smul.u32 %s84, 8
    %v86 = vlaneseq
    %v87 = vshrl.u32 %v86, 7
    %p88 = scmp.lt.s32.totalorder %s85, 4
    // Predicated region
    $region22: #{tpu_custom_call.1} parent=1 // pred_check
      %p89 = pneg %p88
    $region23: #{tpu_custom_call.1} parent=1 // pred_check_branch
      %91 = sbr.rel (%p89) target = $region25
    $region24: #{tpu_custom_call.1} parent=1 // pred_region
      %s92 = ssub.s32 4, %s85
      %s93 = ssub.s32 %s92, 0
      %v94 = vstv %s93
      %vm95 = vcmp.lt.s32.totalorder %v87, %v94
      %s96 = smul.u32 0, 4
      %s97 = smul.addr %s96, 4
      %s98 = scalar_lea.vmem [#allocation3], %s97
      %v99 = vld [vmem:[%s98] sm:$0xff]
      %v100 = vld [vmem:[%s98 + $0x8] sm:$0xff]
      %v101 = vld [vmem:[%s98 + $0x10] sm:$0xff]
      %v102 = vld [vmem:[%s98 + $0x18] sm:$0xff]
      %107 = vst [vmem:[#allocation1] ss:$2 sm:$0xff] %v99
      %s108 = scalar_lea.vmem [#allocation1], 1
      %109 = vst [vmem:[%s108] ss:$2 sm:$0xff] %v101
      %s110 = scalar_lea.vmem [#allocation1], 16
      %111 = vst [vmem:[%s110] ss:$2 sm:$0xff] %v100
      %s112 = scalar_lea.vmem [#allocation1], 17
      %113 = vst [vmem:[%s112] ss:$2 sm:$0xff] %v102
      %v114 = vld.sshfl [vmem:[#allocation1] sm:$0xff pattern:$0x75316420]
      %v115 = vld.sshfl [vmem:[#allocation1 + $0x8] sm:$0xff pattern:$0x75316420]
      %v116 = vld.sshfl [vmem:[#allocation1 + $0x10] sm:$0xff pattern:$0x75316420]
      %v117 = vld.sshfl [vmem:[#allocation1 + $0x18] sm:$0xff pattern:$0x75316420]
      %v122 = vsel %vm95, %v114, 1.0
      %v123 = vsel %vm95, %v115, 1.0
      %v124 = vsel %vm95, %v116, 1.0
      %v125 = vsel %vm95, %v117, 1.0
      %s126 = smul.addr %s96, 4
      %s127 = scalar_lea.vmem [#allocation6], %s126
      %v128 = vld [vmem:[%s127] sm:$0xff]
      %v129 = vld [vmem:[%s127 + $0x8] sm:$0xff]
      %v130 = vld [vmem:[%s127 + $0x10] sm:$0xff]
      %v131 = vld [vmem:[%s127 + $0x18] sm:$0xff]
      %136 = vst [vmem:[#allocation1] ss:$2 sm:$0xff] %v128
      %s137 = scalar_lea.vmem [#allocation1], 1
      %138 = vst [vmem:[%s137] ss:$2 sm:$0xff] %v130
      %s139 = scalar_lea.vmem [#allocation1], 16
      %140 = vst [vmem:[%s139] ss:$2 sm:$0xff] %v129
      %s141 = scalar_lea.vmem [#allocation1], 17
      %142 = vst [vmem:[%s141] ss:$2 sm:$0xff] %v131
      %v143 = vld.sshfl [vmem:[#allocation1] sm:$0xff pattern:$0x75316420]
      %v144 = vld.sshfl [vmem:[#allocation1 + $0x8] sm:$0xff pattern:$0x75316420]
      %v145 = vld.sshfl [vmem:[#allocation1 + $0x10] sm:$0xff pattern:$0x75316420]
      %v146 = vld.sshfl [vmem:[#allocation1 + $0x18] sm:$0xff pattern:$0x75316420]
      %v151 = vsel %vm95, %v143, 1.0
      %v152 = vsel %vm95, %v144, 1.0
      %v153 = vsel %vm95, %v145, 1.0
      %v154 = vsel %vm95, %v146, 1.0
      %v155 = vlog2.pop %v151
      %v156 = vmul.f32 %v155, 0.6931472
      %v157 = vlog2.pop %v152
      %v158 = vmul.f32 %v157, 0.6931472
      %v159 = vlog2.pop %v153
      %v160 = vmul.f32 %v159, 0.6931472
      %v161 = vlog2.pop %v154
      %v162 = vmul.f32 %v161, 0.6931472
      %v163 = vmax.f32 %v156, -100.0
      %v164 = vmax.f32 %v158, -100.0
      %v165 = vmax.f32 %v160, -100.0
      %v166 = vmax.f32 %v162, -100.0
      %v167 = vsub.f32 1.0, %v151
      %v168 = vsub.f32 1.0, %v152
      %v169 = vsub.f32 1.0, %v153
      %v170 = vsub.f32 1.0, %v154
      %v171 = vlog2.pop %v167
      %v172 = vmul.f32 %v171, 0.6931472
      %v173 = vlog2.pop %v168
      %v174 = vmul.f32 %v173, 0.6931472
      %v175 = vlog2.pop %v169
      %v176 = vmul.f32 %v175, 0.6931472
      %v177 = vlog2.pop %v170
      %v178 = vmul.f32 %v177, 0.6931472
      %v179 = vmax.f32 %v172, -100.0
      %v180 = vmax.f32 %v174, -100.0
      %v181 = vmax.f32 %v176, -100.0
      %v182 = vmax.f32 %v178, -100.0
      %v183 = vsub.f32 %v163, %v179
      %v184 = vsub.f32 %v164, %v180
      %v185 = vsub.f32 %v165, %v181
      %v186 = vsub.f32 %v166, %v182
      %v187 = vmul.f32 %v122, %v183
      %v188 = vmul.f32 %v123, %v184
      %v189 = vmul.f32 %v124, %v185
      %v190 = vmul.f32 %v125, %v186
      %v191 = vadd.f32 %v179, %v187
      %v192 = vadd.f32 %v180, %v188
      %v193 = vadd.f32 %v181, %v189
      %v194 = vadd.f32 %v182, %v190
      %v195 = vld [vmem:[#allocation2] sm:$0xff]
      %v196 = vld [vmem:[#allocation2 + $0x8] sm:$0xff]
      %v197 = vld [vmem:[#allocation2 + $0x10] sm:$0xff]
      %v198 = vld [vmem:[#allocation2 + $0x18] sm:$0xff]
      %v199 = vadd.f32 %v191, 0.0
      %v200 = vadd.f32 %v192, 0.0
      %v201 = vadd.f32 %v193, 0.0
      %v202 = vadd.f32 %v194, 0.0
      %v203 = vadd.f32 %v195, %v199
      %v204 = vadd.f32 %v196, %v200
      %v205 = vadd.f32 %v197, %v201
      %v206 = vadd.f32 %v198, %v202
      %207 = vst [vmem:[#allocation2] sm:$0xff] %v203
      %208 = vst [vmem:[#allocation2 + $0x8] sm:$0xff] %v204
      %209 = vst [vmem:[#allocation2 + $0x10] sm:$0xff] %v205
      %210 = vst [vmem:[#allocation2 + $0x18] sm:$0xff] %v206
    $region25: #{tpu_custom_call.1} parent=1 // pred_fallthru
      _
    // Predicated region
    $region26: #{tpu_custom_call.1} parent=1 // pred_check
      %p211 = pneg %p76
    $region27: #{tpu_custom_call.1} parent=1 // pred_check_branch
      %213 = sbr.rel (%p211) target = $region29
    $region28: #{tpu_custom_call.1} parent=1 // pred_region
      %v214 = vld [vmem:[#allocation2] sm:$0xff]
      %v215 = vld [vmem:[#allocation2 + $0x8] sm:$0xff]
      %v216 = vld [vmem:[#allocation2 + $0x10] sm:$0xff]
      %v217 = vld [vmem:[#allocation2 + $0x18] sm:$0xff]
      %v218 = vsub.f32 0.0, %v214
      %v219 = vsub.f32 0.0, %v215
      %v220 = vsub.f32 0.0, %v216
      %v221 = vsub.f32 0.0, %v217
      %222 = vst [vmem:[#allocation8] sm:$0xff] %v218
      %223 = vst [vmem:[#allocation8 + $0x8] sm:$0xff] %v219
      %224 = vst [vmem:[#allocation8 + $0x10] sm:$0xff] %v220
      %225 = vst [vmem:[#allocation8 + $0x18] sm:$0xff] %v221
    $region29: #{tpu_custom_call.1} parent=1 // pred_fallthru
      _
    // Predicated region
    $region30: #{tpu_custom_call.1} parent=1 // pred_check
      _
    $region31: #{tpu_custom_call.1} parent=1 // pred_check_branch
      %227 = sbr.rel (0) target = $region33
    $region32: #{tpu_custom_call.1} parent=1 // pred_region
      %229 = vsyncadd [#allocation5], 0
      %s231 = sshll.u32 [#allocation8], 4
      %s232 = int_to_ptr.vmem [resolvable:$true] %s231
      %s233 = sshll.u32 %s2, 4
      %s234 = int_to_ptr.hbm [resolvable:$true] %s233
      %236 = dma.vmem_to_hbm [thread:$0]  %s232, 512, %s234, [#allocation5]
    $region33: #{tpu_custom_call.1} parent=1 // pred_fallthru
      _
    // Predicated region
    $region34: #{tpu_custom_call.1} parent=1 // pred_check
      _
    $region35: #{tpu_custom_call.1} parent=1 // pred_check_branch
      %238 = sbr.rel (0) target = $region37
    $region36: #{tpu_custom_call.1} parent=1 // pred_region
      %240 = dma.done [#allocation5], 512
    $region37: #{tpu_custom_call.1} parent=1 // pred_fallthru
      _
    %241 = vsyncpa [#allocation4], 1
    %242 = vsyncpa [#allocation7], 1
    %243 = vsyncpa [#allocation5], 1

</llo_original>
